<compile_context>
chip_gen: v6e
topology: v6e:2x2x1
jax: 0.10.0
libtpu: 0.0.40
codegen_flags: <defaults>
</compile_context>

<pallas_src>
import functools

import jax
import jax.numpy as jnp
from jax.experimental import pallas as pl
from jax.experimental.pallas import tpu as pltpu


def _round_up(x, m):
    return (x + m - 1) // m * m


# ---------------------------------------------------------------------------
# Kernel: one batch tile, batch on the 128-lane axis.
# ---------------------------------------------------------------------------
def deepfm_kernel(lin_ref, x_ref, s_ref,
                  w1_ref, b1_ref, w2_ref, b2_ref, w3_ref, b3_ref,
                  out_ref):
    # lin_ref : (F_pad, BT)   f32   per-field 1-d "linear" embeddings (transposed, zero-padded)
    # x_ref   : (D_pad, BT)   f32   flattened field embeddings (transposed, zero-padded)
    # s_ref   : (E, D_pad)    f32   FM field-sum reduction matrix (MXU field sum)
    # w1_ref  : (H1p, D_pad)  bf16  zero-padded MLP weights, PyTorch (out, in) layout
    # b1_ref  : (H1p, 1)      f32
    # w2_ref  : (H2p, H1p)    bf16
    # b2_ref  : (H2p, 1)      f32
    # w3_ref  : (H2p, 1)      f32
    # b3_ref  : (1, 1)        f32
    # out_ref : (1, BT)       f32   sigmoid(logits), lane-dense
    x = x_ref[...]                                                     # (D_pad, BT)

    # ---- first-order linear term -> (1, BT)
    linear_row = jnp.sum(lin_ref[...], axis=0, keepdims=True)

    # ---- FM second-order term; field sums on the MXU -> (1, BT)
    sum_embed = jnp.dot(s_ref[...], x, preferred_element_type=jnp.float32)  # (E, BT)
    sum_square = jnp.sum(sum_embed * sum_embed, axis=0, keepdims=True)
    square_sum = jnp.sum(x * x, axis=0, keepdims=True)
    fm_row = 0.5 * (sum_square - square_sum)

    # ---- deep MLP (bf16 MXU matmuls, f32 accumulation).
    # TODO(synk): nn.Dropout is treated as eval-mode identity (training-mode RNG
    # has no bitwise-equivalent counterpart here).
    xb = x.astype(jnp.bfloat16)
    h = jnp.dot(w1_ref[...], xb, preferred_element_type=jnp.float32) + b1_ref[...]
    h = jnp.maximum(h, 0.0).astype(jnp.bfloat16)                       # (H1p, BT)
    h = jnp.dot(w2_ref[...], h, preferred_element_type=jnp.float32) + b2_ref[...]
    h = jnp.maximum(h, 0.0)                                            # (H2p, BT) f32
    # final (H2p -> 1) layer as VPU multiply + sublane reduction (no M=... x1 matmul)
    dnn_row = jnp.sum(h * w3_ref[...], axis=0, keepdims=True) + b3_ref[...]

    logits = linear_row + fm_row + dnn_row                             # (1, BT)
    out_ref[...] = jax.nn.sigmoid(logits)                              # exp + recip on the EUP


# ---------------------------------------------------------------------------
# Wrapper
# ---------------------------------------------------------------------------
@functools.partial(jax.jit, static_argnames=("b_tile",))
def deepfm_forward(x, kp, b_tile=512):
    """x: (B, F) int32 categorical indices. kp: packed kernel params (pack_params)."""
    B, F = x.shape
    E = kp["s"].shape[0]
    D = F * E
    D_pad = kp["w1"].shape[1]
    H1p = kp["w1"].shape[0]
    H2p = kp["w2"].shape[0]
    F_pad = _round_up(F, 8)

    bt = _round_up(min(b_tile, _round_up(B, 128)), 128)
    B_pad = _round_up(B, bt)
    n_tiles = B_pad // bt

    # ---- glue: ONE fused gather per table (offset-indexed), producing the slab once.
    gidx = (x.astype(jnp.int32) + kp["offsets"][None, :]).reshape(-1)  # (B*F,)
    dnn = jnp.take(kp["table"], gidx, axis=0).reshape(B, D)            # (B, F*E)
    lin = jnp.take(kp["lin_table"], gidx, axis=0).reshape(B, F)        # (B, F)

    # Transposed + zero-padded so batch rides the 128-lane axis in the kernel.
    x_t = jnp.zeros((D_pad, B_pad), jnp.float32).at[:D, :B].set(dnn.T)
    lin_t = jnp.zeros((F_pad, B_pad), jnp.float32).at[:F, :B].set(lin.T)

    flops = 2 * B_pad * (D_pad * H1p + H1p * H2p + H2p + E * D_pad)
    bytes_accessed = (4 * (D_pad * B_pad + F_pad * B_pad + B_pad)
                      + 2 * (D_pad * H1p + H1p * H2p)
                      + 4 * (E * D_pad + H1p + H2p + H2p + 1))

    out = pl.pallas_call(
        deepfm_kernel,
        out_shape=jax.ShapeDtypeStruct((1, B_pad), jnp.float32),
        grid=(n_tiles,),
        in_specs=[
            pl.BlockSpec((F_pad, bt), lambda i: (0, i)),     # lin_t  (tiled over batch)
            pl.BlockSpec((D_pad, bt), lambda i: (0, i)),     # x_t    (tiled over batch)
            pl.BlockSpec((E, D_pad), lambda i: (0, 0)),      # S      (resident)
            pl.BlockSpec((H1p, D_pad), lambda i: (0, 0)),    # w1
            pl.BlockSpec((H1p, 1), lambda i: (0, 0)),        # b1
            pl.BlockSpec((H2p, H1p), lambda i: (0, 0)),      # w2
            pl.BlockSpec((H2p, 1), lambda i: (0, 0)),        # b2
            pl.BlockSpec((H2p, 1), lambda i: (0, 0)),        # w3
            pl.BlockSpec((1, 1), lambda i: (0, 0)),          # b3
        ],
        out_specs=pl.BlockSpec((1, bt), lambda i: (0, i)),   # lane-dense output row
        compiler_params=pltpu.CompilerParams(
            dimension_semantics=("parallel",)),
        cost_estimate=pl.CostEstimate(
            flops=int(flops), transcendentals=int(B_pad),
            bytes_accessed=int(bytes_accessed)),
    )(lin_t, x_t, kp["s"], kp["w1"], kp["b1"], kp["w2"], kp["b2"],
      kp["w3"], kp["b3"])

    return out[0, :B][:, None]                                         # (B, 1)


# ---------------------------------------------------------------------------
# Parameters
# ---------------------------------------------------------------------------
def init_params(key, field_dims, embed_dim, hidden_dims):
    """Master params matching the PyTorch module's layout (nn.Linear = (out, in))."""
    keys = jax.random.split(key, 2 * len(field_dims) + 6)
    ki = iter(range(len(keys)))

    embed_tables = []
    for fd in field_dims:
        t = 0.05 * jax.random.normal(keys[next(ki)], (fd, embed_dim), jnp.float32)
        t = t.at[0].set(0.0)                     # padding_idx=0 -> zero row
        embed_tables.append(t)

    linear_tables = [0.05 * jax.random.normal(keys[next(ki)], (fd, 1), jnp.float32)
                     for fd in field_dims]

    F, E = len(field_dims), embed_dim
    d_in = F * E
    h1, h2 = hidden_dims
    w1 = 0.1 * jax.random.normal(keys[next(ki)], (h1, d_in), jnp.float32)
    b1 = 0.1 * jax.random.normal(keys[next(ki)], (h1,), jnp.float32)
    w2 = 0.1 * jax.random.normal(keys[next(ki)], (h2, h1), jnp.float32)
    b2 = 0.1 * jax.random.normal(keys[next(ki)], (h2,), jnp.float32)
    w3 = 0.1 * jax.random.normal(keys[next(ki)], (1, h2), jnp.float32)
    b3 = 0.1 * jax.random.normal(keys[next(ki)], (1,), jnp.float32)

    return dict(embed_tables=embed_tables, linear_tables=linear_tables,
                w1=w1, b1=b1, w2=w2, b2=b2, w3=w3, b3=b3)


def pack_params(params):
    """Fuse per-field tables and pre-pad / transpose the MLP weights for the kernel."""
    embed_tables = params["embed_tables"]
    linear_tables = params["linear_tables"]
    F = len(embed_tables)
    E = embed_tables[0].shape[1]
    D = F * E
    D_pad = _round_up(D, 128)
    h1 = params["w1"].shape[0]
    h2 = params["w2"].shape[0]
    H1p = _round_up(h1, 128)
    H2p = _round_up(h2, 128)

    # Fused, offset-indexed embedding tables -> single gather in the wrapper.
    table = jnp.concatenate(embed_tables, axis=0)                     # (sum_fd, E)
    lin_table = jnp.concatenate(linear_tables, axis=0)[:, 0]          # (sum_fd,)
    offs, acc = [], 0
    for t in embed_tables:
        offs.append(acc)
        acc += t.shape[0]
    offsets = jnp.asarray(offs, dtype=jnp.int32)                      # (F,)

    # FM field-sum reduction matrix: column f*E+e has a single 1 in row e.
    s = jnp.zeros((E, D_pad), jnp.float32)
    s = s.at[:, :D].set(jnp.tile(jnp.eye(E, dtype=jnp.float32), (1, F)))

    def pad2(w, rows, cols):
        out = jnp.zeros((rows, cols), jnp.float32)
        return out.at[:w.shape[0], :w.shape[1]].set(w)

    w1 = pad2(params["w1"], H1p, D_pad).astype(jnp.bfloat16)          # (H1p, D_pad)
    b1 = pad2(params["b1"][:, None], H1p, 1)                          # (H1p, 1) f32
    w2 = pad2(params["w2"], H2p, H1p).astype(jnp.bfloat16)            # (H2p, H1p)
    b2 = pad2(params["b2"][:, None], H2p, 1)                          # (H2p, 1) f32
    w3 = pad2(params["w3"].T, H2p, 1)                                 # (H2p, 1) f32
    b3 = params["b3"].reshape(1, 1).astype(jnp.float32)               # (1, 1)

    return dict(table=table, lin_table=lin_table, offsets=offsets, s=s,
                w1=w1, b1=b1, w2=w2, b2=b2, w3=w3, b3=b3)


# ---------------------------------------------------------------------------
# Pure-JAX reference (mirrors the PyTorch forward, eval-mode dropout)
# ---------------------------------------------------------------------------
def deepfm_reference(x, params):
    B, F = x.shape
    E = params["embed_tables"][0].shape[1]
    embed_x = jnp.stack([params["embed_tables"][i][x[:, i]] for i in range(F)], axis=1)
    lin_x = jnp.concatenate([params["linear_tables"][i][x[:, i]] for i in range(F)], axis=1)
    linear_out = jnp.sum(lin_x, axis=1, keepdims=True)
    sum_embed = jnp.sum(embed_x, axis=1)
    fm_out = 0.5 * jnp.sum(sum_embed ** 2 - jnp.sum(embed_x ** 2, axis=1),
                           axis=1, keepdims=True)
    h = embed_x.reshape(B, F * E)
    h = jnp.maximum(h @ params["w1"].T + params["b1"], 0.0)
    h = jnp.maximum(h @ params["w2"].T + params["b2"], 0.0)
    dnn_out = h @ params["w3"].T + params["b3"]
    return jax.nn.sigmoid(linear_out + fm_out + dnn_out)


if __name__ == "__main__":
    # Small deterministic config: 4 fields, embedding_dim=16, hidden=[32, 16]
    field_dims = [10, 20, 30, 40]
    embed_dim = 16
    hidden_dims = [32, 16]
    batch = 8

    key = jax.random.PRNGKey(0)
    pkey, xkey = jax.random.split(key)
    params = init_params(pkey, field_dims, embed_dim, hidden_dims)
    kparams = pack_params(params)

    xkeys = jax.random.split(xkey, len(field_dims))
    cols = [jax.random.randint(xkeys[i], (batch,), 0, fd, dtype=jnp.int32)
            for i, fd in enumerate(field_dims)]
    x = jnp.stack(cols, axis=1)                                       # (B, F) int32

    out = jax.block_until_ready(deepfm_forward(x, kparams))
    ref = deepfm_reference(x, params)

    assert out.shape == (batch, 1)
    # bf16 MXU matmuls in the MLP loosen the tolerance slightly vs the f32 reference.
    assert jnp.allclose(out, ref, atol=1e-2, rtol=1e-2), (out, ref)
    print("KERNEL_OK")
</pallas_src>

<mosaic_0001>
module attributes {stable_mosaic.version = 11 : i64} {
  func.func @deepfm_kernel(%arg0: i32, %arg1: memref<8x128xf32, #tpu.memory_space<vmem>>, %arg2: memref<128x128xf32, #tpu.memory_space<vmem>>, %arg3: memref<16x128xf32, #tpu.memory_space<vmem>>, %arg4: memref<128x128xbf16, #tpu.memory_space<vmem>>, %arg5: memref<128x1xf32, #tpu.memory_space<vmem>>, %arg6: memref<128x128xbf16, #tpu.memory_space<vmem>>, %arg7: memref<128x1xf32, #tpu.memory_space<vmem>>, %arg8: memref<128x1xf32, #tpu.memory_space<vmem>>, %arg9: memref<1x1xf32, #tpu.memory_space<vmem>>, %arg10: memref<1x128xf32, #tpu.memory_space<vmem>>) attributes {dimension_semantics = [#tpu.dimension_semantics<parallel>], iteration_bounds = array<i64: 1>, scalar_prefetch = 0 : i64, scratch_operands = 0 : i64, tpu.core_type = #tpu.core_type<tc>, window_params = [{transform_indices = @transform_0, window_bounds = array<i64: 8, 128>}, {transform_indices = @transform_1, window_bounds = array<i64: 128, 128>}, {pipeline_mode = #tpu.pipeline_mode<synchronous>, transform_indices = @transform_2, window_bounds = array<i64: 16, 128>}, {pipeline_mode = #tpu.pipeline_mode<synchronous>, transform_indices = @transform_3, window_bounds = array<i64: 128, 128>}, {pipeline_mode = #tpu.pipeline_mode<synchronous>, transform_indices = @transform_4, window_bounds = array<i64: 128, 1>}, {pipeline_mode = #tpu.pipeline_mode<synchronous>, transform_indices = @transform_5, window_bounds = array<i64: 128, 128>}, {pipeline_mode = #tpu.pipeline_mode<synchronous>, transform_indices = @transform_6, window_bounds = array<i64: 128, 1>}, {pipeline_mode = #tpu.pipeline_mode<synchronous>, transform_indices = @transform_7, window_bounds = array<i64: 128, 1>}, {pipeline_mode = #tpu.pipeline_mode<synchronous>, transform_indices = @transform_8, window_bounds = array<i64: 1, 1>}, {transform_indices = @transform_9, window_bounds = array<i64: 1, 128>}]} {
    %c0 = arith.constant 0 : index
    %c0_0 = arith.constant 0 : index
    %0 = vector.load %arg2[%c0, %c0_0] : memref<128x128xf32, #tpu.memory_space<vmem>>, vector<128x128xf32>
    %c0_1 = arith.constant 0 : index
    %c0_2 = arith.constant 0 : index
    %1 = vector.load %arg1[%c0_1, %c0_2] : memref<8x128xf32, #tpu.memory_space<vmem>>, vector<8x128xf32>
    %cst = arith.constant dense<0.000000e+00> : vector<128xf32>
    %2 = vector.multi_reduction <add>, %1, %cst [0] : vector<8x128xf32> to vector<128xf32>
    %3 = vector.shape_cast %2 : vector<128xf32> to vector<1x128xf32>
    %c0_3 = arith.constant 0 : index
    %c0_4 = arith.constant 0 : index
    %4 = vector.load %arg3[%c0_3, %c0_4] : memref<16x128xf32, #tpu.memory_space<vmem>>, vector<16x128xf32>
    %cst_5 = arith.constant dense<0.000000e+00> : vector<16x128xf32>
    %5 = tpu.matmul %4, %0, %cst_5 {dimension_numbers = #tpu.dot_dimension_numbers<[1], [0], [0], [1], [0, 0, 1, 1], [], []>} : vector<16x128xf32>, vector<128x128xf32>, vector<16x128xf32> -> vector<16x128xf32>
    %6 = arith.mulf %5, %5 : vector<16x128xf32>
    %cst_6 = arith.constant dense<0.000000e+00> : vector<128xf32>
    %7 = vector.multi_reduction <add>, %6, %cst_6 [0] : vector<16x128xf32> to vector<128xf32>
    %8 = vector.shape_cast %7 : vector<128xf32> to vector<1x128xf32>
    %9 = arith.mulf %0, %0 : vector<128x128xf32>
    %cst_7 = arith.constant dense<0.000000e+00> : vector<128xf32>
    %10 = vector.multi_reduction <add>, %9, %cst_7 [0] : vector<128x128xf32> to vector<128xf32>
    %11 = vector.shape_cast %10 : vector<128xf32> to vector<1x128xf32>
    %12 = arith.subf %8, %11 : vector<1x128xf32>
    %cst_8 = arith.constant 5.000000e-01 : f32
    %13 = vector.broadcast %cst_8 : f32 to vector<1x128xf32>
    %14 = arith.mulf %13, %12 : vector<1x128xf32>
    %15 = arith.truncf %0 : vector<128x128xf32> to vector<128x128xbf16>
    %c0_9 = arith.constant 0 : index
    %c0_10 = arith.constant 0 : index
    %16 = vector.load %arg4[%c0_9, %c0_10] : memref<128x128xbf16, #tpu.memory_space<vmem>>, vector<128x128xbf16>
    %cst_11 = arith.constant dense<0.000000e+00> : vector<128x128xf32>
    %17 = tpu.matmul %16, %15, %cst_11 {dimension_numbers = #tpu.dot_dimension_numbers<[1], [0], [0], [1], [0, 0, 1, 1], [], []>} : vector<128x128xbf16>, vector<128x128xbf16>, vector<128x128xf32> -> vector<128x128xf32>
    %c0_12 = arith.constant 0 : index
    %c0_13 = arith.constant 0 : index
    %18 = vector.load %arg5[%c0_12, %c0_13] : memref<128x1xf32, #tpu.memory_space<vmem>>, vector<128x1xf32>
    %19 = vector.broadcast %18 : vector<128x1xf32> to vector<128x128xf32>
    %20 = arith.addf %17, %19 : vector<128x128xf32>
    %cst_14 = arith.constant 0.000000e+00 : f32
    %21 = vector.broadcast %cst_14 : f32 to vector<128x128xf32>
    %22 = arith.maximumf %20, %21 : vector<128x128xf32>
    %23 = arith.truncf %22 : vector<128x128xf32> to vector<128x128xbf16>
    %c0_15 = arith.constant 0 : index
    %c0_16 = arith.constant 0 : index
    %24 = vector.load %arg6[%c0_15, %c0_16] : memref<128x128xbf16, #tpu.memory_space<vmem>>, vector<128x128xbf16>
    %cst_17 = arith.constant dense<0.000000e+00> : vector<128x128xf32>
    %25 = tpu.matmul %24, %23, %cst_17 {dimension_numbers = #tpu.dot_dimension_numbers<[1], [0], [0], [1], [0, 0, 1, 1], [], []>} : vector<128x128xbf16>, vector<128x128xbf16>, vector<128x128xf32> -> vector<128x128xf32>
    %c0_18 = arith.constant 0 : index
    %c0_19 = arith.constant 0 : index
    %26 = vector.load %arg7[%c0_18, %c0_19] : memref<128x1xf32, #tpu.memory_space<vmem>>, vector<128x1xf32>
    %27 = vector.broadcast %26 : vector<128x1xf32> to vector<128x128xf32>
    %28 = arith.addf %25, %27 : vector<128x128xf32>
    %cst_20 = arith.constant 0.000000e+00 : f32
    %29 = vector.broadcast %cst_20 : f32 to vector<128x128xf32>
    %30 = arith.maximumf %28, %29 : vector<128x128xf32>
    %c0_21 = arith.constant 0 : index
    %c0_22 = arith.constant 0 : index
    %31 = vector.load %arg8[%c0_21, %c0_22] : memref<128x1xf32, #tpu.memory_space<vmem>>, vector<128x1xf32>
    %32 = vector.broadcast %31 : vector<128x1xf32> to vector<128x128xf32>
    %33 = arith.mulf %30, %32 : vector<128x128xf32>
    %cst_23 = arith.constant dense<0.000000e+00> : vector<128xf32>
    %34 = vector.multi_reduction <add>, %33, %cst_23 [0] : vector<128x128xf32> to vector<128xf32>
    %35 = vector.shape_cast %34 : vector<128xf32> to vector<1x128xf32>
    %c0_24 = arith.constant 0 : index
    %c0_25 = arith.constant 0 : index
    %36 = vector.load %arg9[%c0_24, %c0_25] : memref<1x1xf32, #tpu.memory_space<vmem>>, vector<1x1xf32>
    %37 = vector.broadcast %36 : vector<1x1xf32> to vector<1x128xf32>
    %38 = arith.addf %35, %37 : vector<1x128xf32>
    %39 = arith.addf %3, %14 : vector<1x128xf32>
    %40 = arith.addf %39, %38 : vector<1x128xf32>
    %41 = arith.negf %40 : vector<1x128xf32>
    %42 = math.exp %41 : vector<1x128xf32>
    %cst_26 = arith.constant 1.000000e+00 : f32
    %43 = vector.broadcast %cst_26 : f32 to vector<1x128xf32>
    %44 = arith.addf %43, %42 : vector<1x128xf32>
    %45 = arith.divf %43, %44 : vector<1x128xf32>
    %c0_27 = arith.constant 0 : index
    %c0_28 = arith.constant 0 : index
    %46 = vector.load %arg10[%c0_27, %c0_28] : memref<1x128xf32, #tpu.memory_space<vmem>>, vector<1x128xf32>
    tpu.vector_store %arg10[%c0_27, %c0_28], %45 {strides = array<i32>} : memref<1x128xf32, #tpu.memory_space<vmem>>, vector<1x128xf32>,
    return
  }
  func.func @transform_0(%arg0: i32) -> (i32, i32) {
    %c0_i32 = arith.constant 0 : i32
    %c0_i32_0 = arith.constant 0 : i32
    return %c0_i32, %arg0 : i32, i32
  }
  func.func @transform_1(%arg0: i32) -> (i32, i32) {
    %c0_i32 = arith.constant 0 : i32
    %c0_i32_0 = arith.constant 0 : i32
    return %c0_i32, %arg0 : i32, i32
  }
  func.func @transform_2(%arg0: i32) -> (i32, i32) {
    %c0_i32 = arith.constant 0 : i32
    %c0_i32_0 = arith.constant 0 : i32
    %c0_i32_1 = arith.constant 0 : i32
    return %c0_i32, %c0_i32_0 : i32, i32
  }
  func.func @transform_3(%arg0: i32) -> (i32, i32) {
    %c0_i32 = arith.constant 0 : i32
    %c0_i32_0 = arith.constant 0 : i32
    %c0_i32_1 = arith.constant 0 : i32
    return %c0_i32, %c0_i32_0 : i32, i32
  }
  func.func @transform_4(%arg0: i32) -> (i32, i32) {
    %c0_i32 = arith.constant 0 : i32
    %c0_i32_0 = arith.constant 0 : i32
    %c0_i32_1 = arith.constant 0 : i32
    return %c0_i32, %c0_i32_0 : i32, i32
  }
  func.func @transform_5(%arg0: i32) -> (i32, i32) {
    %c0_i32 = arith.constant 0 : i32
    %c0_i32_0 = arith.constant 0 : i32
    %c0_i32_1 = arith.constant 0 : i32
    return %c0_i32, %c0_i32_0 : i32, i32
  }
  func.func @transform_6(%arg0: i32) -> (i32, i32) {
    %c0_i32 = arith.constant 0 : i32
    %c0_i32_0 = arith.constant 0 : i32
    %c0_i32_1 = arith.constant 0 : i32
    return %c0_i32, %c0_i32_0 : i32, i32
  }
  func.func @transform_7(%arg0: i32) -> (i32, i32) {
    %c0_i32 = arith.constant 0 : i32
    %c0_i32_0 = arith.constant 0 : i32
    %c0_i32_1 = arith.constant 0 : i32
    return %c0_i32, %c0_i32_0 : i32, i32
  }
  func.func @transform_8(%arg0: i32) -> (i32, i32) {
    %c0_i32 = arith.constant 0 : i32
    %c0_i32_0 = arith.constant 0 : i32
    %c0_i32_1 = arith.constant 0 : i32
    return %c0_i32, %c0_i32_0 : i32, i32
  }
  func.func @transform_9(%arg0: i32) -> (i32, i32) {
    %c0_i32 = arith.constant 0 : i32
    %c0_i32_0 = arith.constant 0 : i32
    return %c0_i32, %arg0 : i32, i32
  }
}

</mosaic_0001>

<llo_original>
// kernel: deepfm_forward.1
$region0: #{deepfm_forward.1}
  #allocation0 [shape = 'u32[]', space=smem, size = 0x4, offset = 0x4, fixed_abs, tag = 'smem constant byte address 0x4 - core index']
  #allocation1 [shape = 'u32[144,128]{1,0:T(1,128)}', space=vmem, size = 0x12000, scoped, tag = 'internal scratch']
  #allocation2 [shape = 'f32[1,1]{1,0:T(1,128)S(1)}', space=vmem, size = 0x200, scoped, tag = 'scoped memory for deepfm_forward.1']
  %s0 = inlined_call_operand.vmem [shape: f32[8,128], index: 0, kind: input, shape index: {}]
  %s1 = inlined_call_operand.vmem [shape: f32[128,128], index: 1, kind: input, shape index: {}]
  %s2 = inlined_call_operand.vmem [shape: f32[16,128], index: 2, kind: input, shape index: {}]
  %s3 = inlined_call_operand.vmem [shape: bf16[128,128], index: 3, kind: input, shape index: {}]
  %s4 = inlined_call_operand.vmem [shape: f32[128,1], index: 4, kind: input, shape index: {}]
  %s5 = inlined_call_operand.vmem [shape: bf16[128,128], index: 5, kind: input, shape index: {}]
  %s6 = inlined_call_operand.vmem [shape: f32[128,1], index: 6, kind: input, shape index: {}]
  %s7 = inlined_call_operand.vmem [shape: f32[128,1], index: 7, kind: input, shape index: {}]
  %s8 = inlined_call_operand.<no memory space> [shape: f32[1,1], index: 8, kind: input, shape index: {}]
  %s9 = inlined_call_operand.vmem [shape: f32[1,128], index: 9, kind: output, shape index: {}]
  %s10 = sld [smem:[#allocation0]]
  $region46: #{deepfm_forward.1} parent=0
    _
  %s12 = ssub.s32 1, %s10
  %s13 = scalar_select 0, %s12, %s10
  %v14 = vstv %s8
  %15 = vst [vmem:[#allocation2] sm:$0x1] %v14
  // Predicated region
  $region2: #{deepfm_forward.1} parent=0 // pred_check
    _
  $region3: #{deepfm_forward.1} parent=0 // pred_check_branch
    %17 = sbr.rel (0) target = $region5
  $region4: #{deepfm_forward.1} parent=0 // pred_region
    _
  $region5: #{deepfm_forward.1} parent=0 // pred_fallthru
    _
  // Predicated region
  $region6: #{deepfm_forward.1} parent=0 // pred_check
    _
  $region7: #{deepfm_forward.1} parent=0 // pred_check_branch
    %19 = sbr.rel (0) target = $region9
  $region8: #{deepfm_forward.1} parent=0 // pred_region
    _
  $region9: #{deepfm_forward.1} parent=0 // pred_fallthru
    _
  // Predicated region
  $region10: #{deepfm_forward.1} parent=0 // pred_check
    _
  $region11: #{deepfm_forward.1} parent=0 // pred_check_branch
    %21 = sbr.rel (0) target = $region13
  $region12: #{deepfm_forward.1} parent=0 // pred_region
    _
  $region13: #{deepfm_forward.1} parent=0 // pred_fallthru
    _
  // Predicated region
  $region14: #{deepfm_forward.1} parent=0 // pred_check
    _
  $region15: #{deepfm_forward.1} parent=0 // pred_check_branch
    %23 = sbr.rel (0) target = $region17
  $region16: #{deepfm_forward.1} parent=0 // pred_region
    _
  $region17: #{deepfm_forward.1} parent=0 // pred_fallthru
    _
  // Predicated region
  $region18: #{deepfm_forward.1} parent=0 // pred_check
    _
  $region19: #{deepfm_forward.1} parent=0 // pred_check_branch
    %25 = sbr.rel (0) target = $region21
  $region20: #{deepfm_forward.1} parent=0 // pred_region
    _
  $region21: #{deepfm_forward.1} parent=0 // pred_fallthru
    _
  // Predicated region
  $region22: #{deepfm_forward.1} parent=0 // pred_check
    _
  $region23: #{deepfm_forward.1} parent=0 // pred_check_branch
    %27 = sbr.rel (0) target = $region25
  $region24: #{deepfm_forward.1} parent=0 // pred_region
    _
  $region25: #{deepfm_forward.1} parent=0 // pred_fallthru
    _
  // Predicated region
  $region26: #{deepfm_forward.1} parent=0 // pred_check
    _
  $region27: #{deepfm_forward.1} parent=0 // pred_check_branch
    %29 = sbr.rel (0) target = $region29
  $region28: #{deepfm_forward.1} parent=0 // pred_region
    _
  $region29: #{deepfm_forward.1} parent=0 // pred_fallthru
    _
  // Predicated region
  $region30: #{deepfm_forward.1} parent=0 // pred_check
    _
  $region31: #{deepfm_forward.1} parent=0 // pred_check_branch
    %31 = sbr.rel (0) target = $region33
  $region32: #{deepfm_forward.1} parent=0 // pred_region
    _
  $region33: #{deepfm_forward.1} parent=0 // pred_fallthru
    _
  // Predicated region
  $region34: #{deepfm_forward.1} parent=0 // pred_check
    _
  $region35: #{deepfm_forward.1} parent=0 // pred_check_branch
    %33 = sbr.rel (0) target = $region37
  $region36: #{deepfm_forward.1} parent=0 // pred_region
    _
  $region37: #{deepfm_forward.1} parent=0 // pred_fallthru
    _
  %v35 = vld [vmem:[%s1] sm:$0xff]
  %v36 = vld [vmem:[%s1 + $0x8] sm:$0xff]
  %v37 = vld [vmem:[%s1 + $0x10] sm:$0xff]
  %v38 = vld [vmem:[%s1 + $0x18] sm:$0xff]
  %v39 = vld [vmem:[%s1 + $0x20] sm:$0xff]
  %v40 = vld [vmem:[%s1 + $0x28] sm:$0xff]
  %v41 = vld [vmem:[%s1 + $0x30] sm:$0xff]
  %v42 = vld [vmem:[%s1 + $0x38] sm:$0xff]
  %v43 = vld [vmem:[%s1 + $0x40] sm:$0xff]
  %v44 = vld [vmem:[%s1 + $0x48] sm:$0xff]
  %v45 = vld [vmem:[%s1 + $0x50] sm:$0xff]
  %v46 = vld [vmem:[%s1 + $0x58] sm:$0xff]
  %v47 = vld [vmem:[%s1 + $0x60] sm:$0xff]
  %v48 = vld [vmem:[%s1 + $0x68] sm:$0xff]
  %v49 = vld [vmem:[%s1 + $0x70] sm:$0xff]
  %v50 = vld [vmem:[%s1 + $0x78] sm:$0xff]
  %v51 = vld [vmem:[%s0] sm:$0xff]
  %v52 = vrot.slane %v51, 4
  %v53 = vadd.f32 %v51, %v52
  %v54 = vrot.slane %v53, 2
  %v55 = vadd.f32 %v53, %v54
  %v56 = vrot.slane %v55, 1
  %v57 = vadd.f32 %v55, %v56
  %v58 = vld [vmem:[%s2] sm:$0xff]
  %v59 = vld [vmem:[%s2 + $0x8] sm:$0xff]
  %60 = vmatprep.subr.mxu0 0.0
  %61 = vmatpush1.msra.mxu0 %v50
  %62 = vmatprep.subr.mxu0 0.0
  %63 = vmatpush1.msra.mxu0 %v49
  %64 = vmatprep.subr.mxu0 0.0
  %65 = vmatpush1.msra.mxu0 %v48
  %66 = vmatprep.subr.mxu0 0.0
  %67 = vmatpush1.msra.mxu0 %v47
  %68 = vmatprep.subr.mxu0 0.0
  %69 = vmatpush1.msra.mxu0 %v46
  %70 = vmatprep.subr.mxu0 0.0
  %71 = vmatpush1.msra.mxu0 %v45
  %72 = vmatprep.subr.mxu0 0.0
  %73 = vmatpush1.msra.mxu0 %v44
  %74 = vmatprep.subr.mxu0 0.0
  %75 = vmatpush1.msra.mxu0 %v43
  %76 = vmatprep.subr.mxu0 0.0
  %77 = vmatpush1.msra.mxu0 %v42
  %78 = vmatprep.subr.mxu0 0.0
  %79 = vmatpush1.msra.mxu0 %v41
  %80 = vmatprep.subr.mxu0 0.0
  %81 = vmatpush1.msra.mxu0 %v40
  %82 = vmatprep.subr.mxu0 0.0
  %83 = vmatpush1.msra.mxu0 %v39
  %84 = vmatprep.subr.mxu0 0.0
  %85 = vmatpush1.msra.mxu0 %v38
  %86 = vmatprep.subr.mxu0 0.0
  %87 = vmatpush1.msra.mxu0 %v37
  %88 = vmatprep.subr.mxu0 0.0
  %89 = vmatpush1.msra.mxu0 %v36
  %90 = vmatprep.subr.mxu0 0.0
  %91 = vmatpush1.msra.mxu0 %v35
  %92 = vmatprep.subr.mxu0 0.0
  %93 = vmatpush2.msra.mxu0 0.0
  %94 = vmatprep.subr.mxu0 0.0
  %95 = vmatpush2.msra.mxu0 0.0
  %96 = vmatprep.subr.mxu0 0.0
  %97 = vmatpush2.msra.mxu0 0.0
  %98 = vmatprep.subr.mxu0 0.0
  %99 = vmatpush2.msra.mxu0 0.0
  %100 = vmatprep.subr.mxu0 0.0
  %101 = vmatpush2.msra.mxu0 0.0
  %102 = vmatprep.subr.mxu0 0.0
  %103 = vmatpush2.msra.mxu0 0.0
  %104 = vmatprep.subr.mxu0 0.0
  %105 = vmatpush2.msra.mxu0 0.0
  %106 = vmatprep.subr.mxu0 0.0
  %107 = vmatpush2.msra.mxu0 0.0
  %108 = vmatprep.subr.mxu0 0.0
  %109 = vmatpush2.msra.mxu0 0.0
  %110 = vmatprep.subr.mxu0 0.0
  %111 = vmatpush2.msra.mxu0 0.0
  %112 = vmatprep.subr.mxu0 0.0
  %113 = vmatpush2.msra.mxu0 0.0
  %114 = vmatprep.subr.mxu0 0.0
  %115 = vmatpush2.msra.mxu0 0.0
  %116 = vmatprep.subr.mxu0 0.0
  %117 = vmatpush2.msra.mxu0 0.0
  %118 = vmatprep.subr.mxu0 0.0
  %119 = vmatpush2.msra.mxu0 0.0
  %120 = vmatprep.subr.mxu0 0.0
  %121 = vmatpush2.msra.mxu0 0.0
  %122 = vmatprep.subr.mxu0 0.0
  %123 = vmatpush2.msra.mxu0 0.0
  %124 = vmatprep.mubr.f32.mxu0 0.0
  %125 = vmatmul.mubr.f32.gmra.mxu0 %v58
  %v126 = vpop.f32.mrf.mxu0
  %v127 = vadd.f32 0.0, %v126
  %v128 = vpop.f32.mrf.mxu0
  %129 = vmatprep.mubr.f32.mxu0 0.0
  %130 = vmatmul.mubr.f32.gmra.mxu0 %v59
  %v131 = vpop.f32.mrf.mxu0
  %v132 = vadd.f32 0.0, %v131
  %v133 = vpop.f32.mrf.mxu0
  %134 = vdwg.mxu0
  %v135 = vmul.f32 %v127, %v127
  %v136 = vmul.f32 %v132, %v132
  %v137 = vadd.f32 %v135, %v136
  %v138 = vrot.slane %v137, 4
  %v139 = vadd.f32 %v137, %v138
  %v140 = vrot.slane %v139, 2
  %v141 = vadd.f32 %v139, %v140
  %v142 = vrot.slane %v141, 1
  %v143 = vadd.f32 %v141, %v142
  %v144 = vmul.f32 %v35, %v35
  %v145 = vmul.f32 %v36, %v36
  %v146 = vmul.f32 %v37, %v37
  %v147 = vmul.f32 %v38, %v38
  %v148 = vmul.f32 %v39, %v39
  %v149 = vmul.f32 %v40, %v40
  %v150 = vmul.f32 %v41, %v41
  %v151 = vmul.f32 %v42, %v42
  %v152 = vmul.f32 %v43, %v43
  %v153 = vmul.f32 %v44, %v44
  %v154 = vmul.f32 %v45, %v45
  %v155 = vmul.f32 %v46, %v46
  %v156 = vmul.f32 %v47, %v47
  %v157 = vmul.f32 %v48, %v48
  %v158 = vmul.f32 %v49, %v49
  %v159 = vmul.f32 %v50, %v50
  %v160 = vadd.f32 %v144, %v145
  %v161 = vadd.f32 %v160, %v146
  %v162 = vadd.f32 %v161, %v147
  %v163 = vadd.f32 %v162, %v148
  %v164 = vadd.f32 %v163, %v149
  %v165 = vadd.f32 %v164, %v150
  %v166 = vadd.f32 %v165, %v151
  %v167 = vadd.f32 %v166, %v152
  %v168 = vadd.f32 %v167, %v153
  %v169 = vadd.f32 %v168, %v154
  %v170 = vadd.f32 %v169, %v155
  %v171 = vadd.f32 %v170, %v156
  %v172 = vadd.f32 %v171, %v157
  %v173 = vadd.f32 %v172, %v158
  %v174 = vadd.f32 %v173, %v159
  %v175 = vrot.slane %v174, 4
  %v176 = vadd.f32 %v174, %v175
  %v177 = vrot.slane %v176, 2
  %v178 = vadd.f32 %v176, %v177
  %v179 = vrot.slane %v178, 1
  %v180 = vadd.f32 %v178, %v179
  %v181 = vsub.f32 %v143, %v180
  %v182 = vmul.f32 %v181, 0.5
  %v183 = vpack.c.bf16 %v36, %v35
  %v184 = vpack.c.bf16 %v38, %v37
  %v185 = vpack.c.bf16 %v40, %v39
  %v186 = vpack.c.bf16 %v42, %v41
  %v187 = vpack.c.bf16 %v44, %v43
  %v188 = vpack.c.bf16 %v46, %v45
  %v189 = vpack.c.bf16 %v48, %v47
  %v190 = vpack.c.bf16 %v50, %v49
  %v191 = vld [vmem:[%s3] sm:$0xf]
  %v192 = vld [vmem:[%s3 + $0x4] sm:$0xf]
  %v193 = vld [vmem:[%s3 + $0x8] sm:$0xf]
  %v194 = vld [vmem:[%s3 + $0xc] sm:$0xf]
  %v195 = vld [vmem:[%s3 + $0x10] sm:$0xf]
  %v196 = vld [vmem:[%s3 + $0x14] sm:$0xf]
  %v197 = vld [vmem:[%s3 + $0x18] sm:$0xf]
  %v198 = vld [vmem:[%s3 + $0x1c] sm:$0xf]
  %v199 = vld [vmem:[%s3 + $0x20] sm:$0xf]
  %v200 = vld [vmem:[%s3 + $0x24] sm:$0xf]
  %v201 = vld [vmem:[%s3 + $0x28] sm:$0xf]
  %v202 = vld [vmem:[%s3 + $0x2c] sm:$0xf]
  %v203 = vld [vmem:[%s3 + $0x30] sm:$0xf]
  %v204 = vld [vmem:[%s3 + $0x34] sm:$0xf]
  %v205 = vld [vmem:[%s3 + $0x38] sm:$0xf]
  %v206 = vld [vmem:[%s3 + $0x3c] sm:$0xf]
  %v207 = vld [vmem:[%s4] sm:$0xff]
  %v208 = vld [vmem:[%s4 + $0x8] sm:$0xff]
  %v209 = vld [vmem:[%s4 + $0x10] sm:$0xff]
  %v210 = vld [vmem:[%s4 + $0x18] sm:$0xff]
  %v211 = vld [vmem:[%s4 + $0x20] sm:$0xff]
  %v212 = vld [vmem:[%s4 + $0x28] sm:$0xff]
  %v213 = vld [vmem:[%s4 + $0x30] sm:$0xff]
  %v214 = vld [vmem:[%s4 + $0x38] sm:$0xff]
  %v215 = vld [vmem:[%s4 + $0x40] sm:$0xff]
  %v216 = vld [vmem:[%s4 + $0x48] sm:$0xff]
  %v217 = vld [vmem:[%s4 + $0x50] sm:$0xff]
  %v218 = vld [vmem:[%s4 + $0x58] sm:$0xff]
  %v219 = vld [vmem:[%s4 + $0x60] sm:$0xff]
  %v220 = vld [vmem:[%s4 + $0x68] sm:$0xff]
  %v221 = vld [vmem:[%s4 + $0x70] sm:$0xff]
  %v222 = vld [vmem:[%s4 + $0x78] sm:$0xff]
  %224 = vset.pattern.permute.xlu0 0
  %225 = vperm.xlu0 %224, %v207
  %v226 = vpop.permute.xlu0 %225
  %229 = vset.pattern.permute.xlu0 0
  %230 = vperm.xlu0 %229, %v208
  %v231 = vpop.permute.xlu0 %230
  %234 = vset.pattern.permute.xlu0 0
  %235 = vperm.xlu0 %234, %v209
  %v236 = vpop.permute.xlu0 %235
  %239 = vset.pattern.permute.xlu0 0
  %240 = vperm.xlu0 %239, %v210
  %v241 = vpop.permute.xlu0 %240
  %244 = vset.pattern.permute.xlu0 0
  %245 = vperm.xlu0 %244, %v211
  %v246 = vpop.permute.xlu0 %245
  %249 = vset.pattern.permute.xlu0 0
  %250 = vperm.xlu0 %249, %v212
  %v251 = vpop.permute.xlu0 %250
  %254 = vset.pattern.permute.xlu0 0
  %255 = vperm.xlu0 %254, %v213
  %v256 = vpop.permute.xlu0 %255
  %259 = vset.pattern.permute.xlu0 0
  %260 = vperm.xlu0 %259, %v214
  %v261 = vpop.permute.xlu0 %260
  %264 = vset.pattern.permute.xlu0 0
  %265 = vperm.xlu0 %264, %v215
  %v266 = vpop.permute.xlu0 %265
  %269 = vset.pattern.permute.xlu0 0
  %270 = vperm.xlu0 %269, %v216
  %v271 = vpop.permute.xlu0 %270
  %274 = vset.pattern.permute.xlu0 0
  %275 = vperm.xlu0 %274, %v217
  %v276 = vpop.permute.xlu0 %275
  %279 = vset.pattern.permute.xlu0 0
  %280 = vperm.xlu0 %279, %v218
  %v281 = vpop.permute.xlu0 %280
  %284 = vset.pattern.permute.xlu0 0
  %285 = vperm.xlu0 %284, %v219
  %v286 = vpop.permute.xlu0 %285
  %289 = vset.pattern.permute.xlu0 0
  %290 = vperm.xlu0 %289, %v220
  %v291 = vpop.permute.xlu0 %290
  %294 = vset.pattern.permute.xlu0 0
  %295 = vperm.xlu0 %294, %v221
  %v296 = vpop.permute.xlu0 %295
  %299 = vset.pattern.permute.xlu0 0
  %300 = vperm.xlu0 %299, %v222
  %v301 = vpop.permute.xlu0 %300
  %v319 = vunpack.c.l.b16 %v191
  %v320 = vunpack.c.l.b16 %v192
  %v321 = vunpack.c.l.b16 %v193
  %v322 = vunpack.c.l.b16 %v194
  %v323 = vunpack.c.l.b16 %v195
  %v324 = vunpack.c.l.b16 %v196
  %v325 = vunpack.c.l.b16 %v197
  %v326 = vunpack.c.l.b16 %v198
  %v327 = vunpack.c.l.b16 %v199
  %v328 = vunpack.c.l.b16 %v200
  %v329 = vunpack.c.l.b16 %v201
  %v330 = vunpack.c.l.b16 %v202
  %v331 = vunpack.c.l.b16 %v203
  %v332 = vunpack.c.l.b16 %v204
  %v333 = vunpack.c.l.b16 %v205
  %v334 = vunpack.c.l.b16 %v206
  %v335 = vpack.c.b16 %v320, %v319
  %v336 = vpack.c.b16 %v322, %v321
  %v337 = vpack.c.b16 %v324, %v323
  %v338 = vpack.c.b16 %v326, %v325
  %v339 = vpack.c.b16 %v328, %v327
  %v340 = vpack.c.b16 %v330, %v329
  %v341 = vpack.c.b16 %v332, %v331
  %v342 = vpack.c.b16 %v334, %v333
  %351 = vmatprep.subr.bf16.mxu0 0
  %352 = vmatpush1.bf16.msra.mxu0 %v190
  %353 = vmatprep.subr.bf16.mxu0 0
  %354 = vmatpush1.bf16.msra.mxu0 %v189
  %355 = vmatprep.subr.bf16.mxu0 0
  %356 = vmatpush1.bf16.msra.mxu0 %v188
  %357 = vmatprep.subr.bf16.mxu0 0
  %358 = vmatpush1.bf16.msra.mxu0 %v187
  %359 = vmatprep.subr.bf16.mxu0 0
  %360 = vmatpush1.bf16.msra.mxu0 %v186
  %361 = vmatprep.subr.bf16.mxu0 0
  %362 = vmatpush1.bf16.msra.mxu0 %v185
  %363 = vmatprep.subr.bf16.mxu0 0
  %364 = vmatpush1.bf16.msra.mxu0 %v184
  %365 = vmatprep.subr.bf16.mxu0 0
  %366 = vmatpush1.bf16.msra.mxu0 %v183
  %367 = vmatprep.subr.bf16.mxu0 0
  %368 = vmatpush2.bf16.msra.mxu0 0
  %369 = vmatprep.subr.bf16.mxu0 0
  %370 = vmatpush2.bf16.msra.mxu0 0
  %371 = vmatprep.subr.bf16.mxu0 0
  %372 = vmatpush2.bf16.msra.mxu0 0
  %373 = vmatprep.subr.bf16.mxu0 0
  %374 = vmatpush2.bf16.msra.mxu0 0
  %375 = vmatprep.subr.bf16.mxu0 0
  %376 = vmatpush2.bf16.msra.mxu0 0
  %377 = vmatprep.subr.bf16.mxu0 0
  %378 = vmatpush2.bf16.msra.mxu0 0
  %379 = vmatprep.subr.bf16.mxu0 0
  %380 = vmatpush2.bf16.msra.mxu0 0
  %381 = vmatprep.subr.bf16.mxu0 0
  %382 = vmatpush2.bf16.msra.mxu0 0
  %383 = vmatprep.mubr.bf16.mxu0 0
  %384 = vmatmul.mubr.bf16.gmra.mxu0 %v335
  %v385 = vpop.f32.mrf.mxu0
  %v386 = vadd.f32 %v226, %v385
  %v387 = vpop.f32.mrf.mxu0
  %v388 = vpop.f32.mrf.mxu0
  %v389 = vadd.f32 %v231, %v388
  %v390 = vpop.f32.mrf.mxu0
  %391 = vmatprep.mubr.bf16.mxu0 0
  %392 = vmatmul.mubr.bf16.gmra.mxu0 %v336
  %v393 = vpop.f32.mrf.mxu0
  %v394 = vadd.f32 %v236, %v393
  %v395 = vpop.f32.mrf.mxu0
  %v396 = vpop.f32.mrf.mxu0
  %v397 = vadd.f32 %v241, %v396
  %v398 = vpop.f32.mrf.mxu0
  %399 = vmatprep.mubr.bf16.mxu0 0
  %400 = vmatmul.mubr.bf16.gmra.mxu0 %v337
  %v401 = vpop.f32.mrf.mxu0
  %v402 = vadd.f32 %v246, %v401
  %v403 = vpop.f32.mrf.mxu0
  %v404 = vpop.f32.mrf.mxu0
  %v405 = vadd.f32 %v251, %v404
  %v406 = vpop.f32.mrf.mxu0
  %407 = vmatprep.mubr.bf16.mxu0 0
  %408 = vmatmul.mubr.bf16.gmra.mxu0 %v338
  %v409 = vpop.f32.mrf.mxu0
  %v410 = vadd.f32 %v256, %v409
  %v411 = vpop.f32.mrf.mxu0
  %v412 = vpop.f32.mrf.mxu0
  %v413 = vadd.f32 %v261, %v412
  %v414 = vpop.f32.mrf.mxu0
  %415 = vmatprep.mubr.bf16.mxu0 0
  %416 = vmatmul.mubr.bf16.gmra.mxu0 %v339
  %v417 = vpop.f32.mrf.mxu0
  %v418 = vadd.f32 %v266, %v417
  %v419 = vpop.f32.mrf.mxu0
  %v420 = vpop.f32.mrf.mxu0
  %v421 = vadd.f32 %v271, %v420
  %v422 = vpop.f32.mrf.mxu0
  %423 = vmatprep.mubr.bf16.mxu0 0
  %424 = vmatmul.mubr.bf16.gmra.mxu0 %v340
  %v425 = vpop.f32.mrf.mxu0
  %v426 = vadd.f32 %v276, %v425
  %v427 = vpop.f32.mrf.mxu0
  %v428 = vpop.f32.mrf.mxu0
  %v429 = vadd.f32 %v281, %v428
  %v430 = vpop.f32.mrf.mxu0
  %431 = vmatprep.mubr.bf16.mxu0 0
  %432 = vmatmul.mubr.bf16.gmra.mxu0 %v341
  %v433 = vpop.f32.mrf.mxu0
  %v434 = vadd.f32 %v286, %v433
  %v435 = vpop.f32.mrf.mxu0
  %v436 = vpop.f32.mrf.mxu0
  %v437 = vadd.f32 %v291, %v436
  %v438 = vpop.f32.mrf.mxu0
  %439 = vmatprep.mubr.bf16.mxu0 0
  %440 = vmatmul.mubr.bf16.gmra.mxu0 %v342
  %v441 = vpop.f32.mrf.mxu0
  %v442 = vadd.f32 %v296, %v441
  %v443 = vpop.f32.mrf.mxu0
  %v444 = vpop.f32.mrf.mxu0
  %v445 = vadd.f32 %v301, %v444
  %v446 = vpop.f32.mrf.mxu0
  %447 = vdwg.mxu0
  %v448 = vmax.f32 %v386, 0.0
  %v449 = vmax.f32 %v389, 0.0
  %v450 = vmax.f32 %v394, 0.0
  %v451 = vmax.f32 %v397, 0.0
  %v452 = vmax.f32 %v402, 0.0
  %v453 = vmax.f32 %v405, 0.0
  %v454 = vmax.f32 %v410, 0.0
  %v455 = vmax.f32 %v413, 0.0
  %v456 = vmax.f32 %v418, 0.0
  %v457 = vmax.f32 %v421, 0.0
  %v458 = vmax.f32 %v426, 0.0
  %v459 = vmax.f32 %v429, 0.0
  %v460 = vmax.f32 %v434, 0.0
  %v461 = vmax.f32 %v437, 0.0
  %v462 = vmax.f32 %v442, 0.0
  %v463 = vmax.f32 %v445, 0.0
  %v464 = vpack.c.bf16 %v449, %v448
  %v465 = vpack.c.bf16 %v451, %v450
  %v466 = vpack.c.bf16 %v453, %v452
  %v467 = vpack.c.bf16 %v455, %v454
  %v468 = vpack.c.bf16 %v457, %v456
  %v469 = vpack.c.bf16 %v459, %v458
  %v470 = vpack.c.bf16 %v461, %v460
  %v471 = vpack.c.bf16 %v463, %v462
  %v472 = vld [vmem:[%s5] sm:$0xf]
  %v473 = vld [vmem:[%s5 + $0x4] sm:$0xf]
  %v474 = vld [vmem:[%s5 + $0x8] sm:$0xf]
  %v475 = vld [vmem:[%s5 + $0xc] sm:$0xf]
  %v476 = vld [vmem:[%s5 + $0x10] sm:$0xf]
  %v477 = vld [vmem:[%s5 + $0x14] sm:$0xf]
  %v478 = vld [vmem:[%s5 + $0x18] sm:$0xf]
  %v479 = vld [vmem:[%s5 + $0x1c] sm:$0xf]
  %v480 = vld [vmem:[%s5 + $0x20] sm:$0xf]
  %v481 = vld [vmem:[%s5 + $0x24] sm:$0xf]
  %v482 = vld [vmem:[%s5 + $0x28] sm:$0xf]
  %v483 = vld [vmem:[%s5 + $0x2c] sm:$0xf]
  %v484 = vld [vmem:[%s5 + $0x30] sm:$0xf]
  %v485 = vld [vmem:[%s5 + $0x34] sm:$0xf]
  %v486 = vld [vmem:[%s5 + $0x38] sm:$0xf]
  %v487 = vld [vmem:[%s5 + $0x3c] sm:$0xf]
  %v488 = vld [vmem:[%s6] sm:$0xff]
  %v489 = vld [vmem:[%s6 + $0x8] sm:$0xff]
  %v490 = vld [vmem:[%s6 + $0x10] sm:$0xff]
  %v491 = vld [vmem:[%s6 + $0x18] sm:$0xff]
  %v492 = vld [vmem:[%s6 + $0x20] sm:$0xff]
  %v493 = vld [vmem:[%s6 + $0x28] sm:$0xff]
  %v494 = vld [vmem:[%s6 + $0x30] sm:$0xff]
  %v495 = vld [vmem:[%s6 + $0x38] sm:$0xff]
  %v496 = vld [vmem:[%s6 + $0x40] sm:$0xff]
  %v497 = vld [vmem:[%s6 + $0x48] sm:$0xff]
  %v498 = vld [vmem:[%s6 + $0x50] sm:$0xff]
  %v499 = vld [vmem:[%s6 + $0x58] sm:$0xff]
  %v500 = vld [vmem:[%s6 + $0x60] sm:$0xff]
  %v501 = vld [vmem:[%s6 + $0x68] sm:$0xff]
  %v502 = vld [vmem:[%s6 + $0x70] sm:$0xff]
  %v503 = vld [vmem:[%s6 + $0x78] sm:$0xff]
  %505 = vset.pattern.permute.xlu0 0
  %506 = vperm.xlu0 %505, %v488
  %v507 = vpop.permute.xlu0 %506
  %510 = vset.pattern.permute.xlu0 0
  %511 = vperm.xlu0 %510, %v489
  %v512 = vpop.permute.xlu0 %511
  %515 = vset.pattern.permute.xlu0 0
  %516 = vperm.xlu0 %515, %v490
  %v517 = vpop.permute.xlu0 %516
  %520 = vset.pattern.permute.xlu0 0
  %521 = vperm.xlu0 %520, %v491
  %v522 = vpop.permute.xlu0 %521
  %525 = vset.pattern.permute.xlu0 0
  %526 = vperm.xlu0 %525, %v492
  %v527 = vpop.permute.xlu0 %526
  %530 = vset.pattern.permute.xlu0 0
  %531 = vperm.xlu0 %530, %v493
  %v532 = vpop.permute.xlu0 %531
  %535 = vset.pattern.permute.xlu0 0
  %536 = vperm.xlu0 %535, %v494
  %v537 = vpop.permute.xlu0 %536
  %540 = vset.pattern.permute.xlu0 0
  %541 = vperm.xlu0 %540, %v495
  %v542 = vpop.permute.xlu0 %541
  %545 = vset.pattern.permute.xlu0 0
  %546 = vperm.xlu0 %545, %v496
  %v547 = vpop.permute.xlu0 %546
  %550 = vset.pattern.permute.xlu0 0
  %551 = vperm.xlu0 %550, %v497
  %v552 = vpop.permute.xlu0 %551
  %555 = vset.pattern.permute.xlu0 0
  %556 = vperm.xlu0 %555, %v498
  %v557 = vpop.permute.xlu0 %556
  %560 = vset.pattern.permute.xlu0 0
  %561 = vperm.xlu0 %560, %v499
  %v562 = vpop.permute.xlu0 %561
  %565 = vset.pattern.permute.xlu0 0
  %566 = vperm.xlu0 %565, %v500
  %v567 = vpop.permute.xlu0 %566
  %570 = vset.pattern.permute.xlu0 0
  %571 = vperm.xlu0 %570, %v501
  %v572 = vpop.permute.xlu0 %571
  %575 = vset.pattern.permute.xlu0 0
  %576 = vperm.xlu0 %575, %v502
  %v577 = vpop.permute.xlu0 %576
  %580 = vset.pattern.permute.xlu0 0
  %581 = vperm.xlu0 %580, %v503
  %v582 = vpop.permute.xlu0 %581
  %v600 = vunpack.c.l.b16 %v472
  %v601 = vunpack.c.l.b16 %v473
  %v602 = vunpack.c.l.b16 %v474
  %v603 = vunpack.c.l.b16 %v475
  %v604 = vunpack.c.l.b16 %v476
  %v605 = vunpack.c.l.b16 %v477
  %v606 = vunpack.c.l.b16 %v478
  %v607 = vunpack.c.l.b16 %v479
  %v608 = vunpack.c.l.b16 %v480
  %v609 = vunpack.c.l.b16 %v481
  %v610 = vunpack.c.l.b16 %v482
  %v611 = vunpack.c.l.b16 %v483
  %v612 = vunpack.c.l.b16 %v484
  %v613 = vunpack.c.l.b16 %v485
  %v614 = vunpack.c.l.b16 %v486
  %v615 = vunpack.c.l.b16 %v487
  %v616 = vpack.c.b16 %v601, %v600
  %v617 = vpack.c.b16 %v603, %v602
  %v618 = vpack.c.b16 %v605, %v604
  %v619 = vpack.c.b16 %v607, %v606
  %v620 = vpack.c.b16 %v609, %v608
  %v621 = vpack.c.b16 %v611, %v610
  %v622 = vpack.c.b16 %v613, %v612
  %v623 = vpack.c.b16 %v615, %v614
  %632 = vmatprep.subr.bf16.mxu0 0
  %633 = vmatpush1.bf16.msra.mxu0 %v471
  %634 = vmatprep.subr.bf16.mxu0 0
  %635 = vmatpush1.bf16.msra.mxu0 %v470
  %636 = vmatprep.subr.bf16.mxu0 0
  %637 = vmatpush1.bf16.msra.mxu0 %v469
  %638 = vmatprep.subr.bf16.mxu0 0
  %639 = vmatpush1.bf16.msra.mxu0 %v468
  %640 = vmatprep.subr.bf16.mxu0 0
  %641 = vmatpush1.bf16.msra.mxu0 %v467
  %642 = vmatprep.subr.bf16.mxu0 0
  %643 = vmatpush1.bf16.msra.mxu0 %v466
  %644 = vmatprep.subr.bf16.mxu0 0
  %645 = vmatpush1.bf16.msra.mxu0 %v465
  %646 = vmatprep.subr.bf16.mxu0 0
  %647 = vmatpush1.bf16.msra.mxu0 %v464
  %648 = vmatprep.subr.bf16.mxu0 0
  %649 = vmatpush2.bf16.msra.mxu0 0
  %650 = vmatprep.subr.bf16.mxu0 0
  %651 = vmatpush2.bf16.msra.mxu0 0
  %652 = vmatprep.subr.bf16.mxu0 0
  %653 = vmatpush2.bf16.msra.mxu0 0
  %654 = vmatprep.subr.bf16.mxu0 0
  %655 = vmatpush2.bf16.msra.mxu0 0
  %656 = vmatprep.subr.bf16.mxu0 0
  %657 = vmatpush2.bf16.msra.mxu0 0
  %658 = vmatprep.subr.bf16.mxu0 0
  %659 = vmatpush2.bf16.msra.mxu0 0
  %660 = vmatprep.subr.bf16.mxu0 0
  %661 = vmatpush2.bf16.msra.mxu0 0
  %662 = vmatprep.subr.bf16.mxu0 0
  %663 = vmatpush2.bf16.msra.mxu0 0
  %664 = vmatprep.mubr.bf16.mxu0 0
  %665 = vmatmul.mubr.bf16.gmra.mxu0 %v616
  %v666 = vpop.f32.mrf.mxu0
  %v667 = vadd.f32 %v507, %v666
  %v668 = vpop.f32.mrf.mxu0
  %v669 = vpop.f32.mrf.mxu0
  %v670 = vadd.f32 %v512, %v669
  %v671 = vpop.f32.mrf.mxu0
  %672 = vmatprep.mubr.bf16.mxu0 0
  %673 = vmatmul.mubr.bf16.gmra.mxu0 %v617
  %v674 = vpop.f32.mrf.mxu0
  %v675 = vadd.f32 %v517, %v674
  %v676 = vpop.f32.mrf.mxu0
  %v677 = vpop.f32.mrf.mxu0
  %v678 = vadd.f32 %v522, %v677
  %v679 = vpop.f32.mrf.mxu0
  %680 = vmatprep.mubr.bf16.mxu0 0
  %681 = vmatmul.mubr.bf16.gmra.mxu0 %v618
  %v682 = vpop.f32.mrf.mxu0
  %v683 = vadd.f32 %v527, %v682
  %v684 = vpop.f32.mrf.mxu0
  %v685 = vpop.f32.mrf.mxu0
  %v686 = vadd.f32 %v532, %v685
  %v687 = vpop.f32.mrf.mxu0
  %688 = vmatprep.mubr.bf16.mxu0 0
  %689 = vmatmul.mubr.bf16.gmra.mxu0 %v619
  %v690 = vpop.f32.mrf.mxu0
  %v691 = vadd.f32 %v537, %v690
  %v692 = vpop.f32.mrf.mxu0
  %v693 = vpop.f32.mrf.mxu0
  %v694 = vadd.f32 %v542, %v693
  %v695 = vpop.f32.mrf.mxu0
  %696 = vmatprep.mubr.bf16.mxu0 0
  %697 = vmatmul.mubr.bf16.gmra.mxu0 %v620
  %v698 = vpop.f32.mrf.mxu0
  %v699 = vadd.f32 %v547, %v698
  %v700 = vpop.f32.mrf.mxu0
  %v701 = vpop.f32.mrf.mxu0
  %v702 = vadd.f32 %v552, %v701
  %v703 = vpop.f32.mrf.mxu0
  %704 = vmatprep.mubr.bf16.mxu0 0
  %705 = vmatmul.mubr.bf16.gmra.mxu0 %v621
  %v706 = vpop.f32.mrf.mxu0
  %v707 = vadd.f32 %v557, %v706
  %v708 = vpop.f32.mrf.mxu0
  %v709 = vpop.f32.mrf.mxu0
  %v710 = vadd.f32 %v562, %v709
  %v711 = vpop.f32.mrf.mxu0
  %712 = vmatprep.mubr.bf16.mxu0 0
  %713 = vmatmul.mubr.bf16.gmra.mxu0 %v622
  %v714 = vpop.f32.mrf.mxu0
  %v715 = vadd.f32 %v567, %v714
  %v716 = vpop.f32.mrf.mxu0
  %v717 = vpop.f32.mrf.mxu0
  %v718 = vadd.f32 %v572, %v717
  %v719 = vpop.f32.mrf.mxu0
  %720 = vmatprep.mubr.bf16.mxu0 0
  %721 = vmatmul.mubr.bf16.gmra.mxu0 %v623
  %v722 = vpop.f32.mrf.mxu0
  %v723 = vadd.f32 %v577, %v722
  %v724 = vpop.f32.mrf.mxu0
  %v725 = vpop.f32.mrf.mxu0
  %v726 = vadd.f32 %v582, %v725
  %v727 = vpop.f32.mrf.mxu0
  %728 = vdwg.mxu0
  %v729 = vmax.f32 %v667, 0.0
  %v730 = vmax.f32 %v670, 0.0
  %v731 = vmax.f32 %v675, 0.0
  %v732 = vmax.f32 %v678, 0.0
  %v733 = vmax.f32 %v683, 0.0
  %v734 = vmax.f32 %v686, 0.0
  %v735 = vmax.f32 %v691, 0.0
  %v736 = vmax.f32 %v694, 0.0
  %v737 = vmax.f32 %v699, 0.0
  %v738 = vmax.f32 %v702, 0.0
  %v739 = vmax.f32 %v707, 0.0
  %v740 = vmax.f32 %v710, 0.0
  %v741 = vmax.f32 %v715, 0.0
  %v742 = vmax.f32 %v718, 0.0
  %v743 = vmax.f32 %v723, 0.0
  %v744 = vmax.f32 %v726, 0.0
  %v745 = vld [vmem:[%s7] sm:$0xff]
  %v746 = vld [vmem:[%s7 + $0x8] sm:$0xff]
  %v747 = vld [vmem:[%s7 + $0x10] sm:$0xff]
  %v748 = vld [vmem:[%s7 + $0x18] sm:$0xff]
  %v749 = vld [vmem:[%s7 + $0x20] sm:$0xff]
  %v750 = vld [vmem:[%s7 + $0x28] sm:$0xff]
  %v751 = vld [vmem:[%s7 + $0x30] sm:$0xff]
  %v752 = vld [vmem:[%s7 + $0x38] sm:$0xff]
  %v753 = vld [vmem:[%s7 + $0x40] sm:$0xff]
  %v754 = vld [vmem:[%s7 + $0x48] sm:$0xff]
  %v755 = vld [vmem:[%s7 + $0x50] sm:$0xff]
  %v756 = vld [vmem:[%s7 + $0x58] sm:$0xff]
  %v757 = vld [vmem:[%s7 + $0x60] sm:$0xff]
  %v758 = vld [vmem:[%s7 + $0x68] sm:$0xff]
  %v759 = vld [vmem:[%s7 + $0x70] sm:$0xff]
  %v760 = vld [vmem:[%s7 + $0x78] sm:$0xff]
  %762 = vset.pattern.permute.xlu0 0
  %763 = vperm.xlu0 %762, %v745
  %v764 = vpop.permute.xlu0 %763
  %767 = vset.pattern.permute.xlu0 0
  %768 = vperm.xlu0 %767, %v746
  %v769 = vpop.permute.xlu0 %768
  %772 = vset.pattern.permute.xlu0 0
  %773 = vperm.xlu0 %772, %v747
  %v774 = vpop.permute.xlu0 %773
  %777 = vset.pattern.permute.xlu0 0
  %778 = vperm.xlu0 %777, %v748
  %v779 = vpop.permute.xlu0 %778
  %782 = vset.pattern.permute.xlu0 0
  %783 = vperm.xlu0 %782, %v749
  %v784 = vpop.permute.xlu0 %783
  %787 = vset.pattern.permute.xlu0 0
  %788 = vperm.xlu0 %787, %v750
  %v789 = vpop.permute.xlu0 %788
  %792 = vset.pattern.permute.xlu0 0
  %793 = vperm.xlu0 %792, %v751
  %v794 = vpop.permute.xlu0 %793
  %797 = vset.pattern.permute.xlu0 0
  %798 = vperm.xlu0 %797, %v752
  %v799 = vpop.permute.xlu0 %798
  %802 = vset.pattern.permute.xlu0 0
  %803 = vperm.xlu0 %802, %v753
  %v804 = vpop.permute.xlu0 %803
  %807 = vset.pattern.permute.xlu0 0
  %808 = vperm.xlu0 %807, %v754
  %v809 = vpop.permute.xlu0 %808
  %812 = vset.pattern.permute.xlu0 0
  %813 = vperm.xlu0 %812, %v755
  %v814 = vpop.permute.xlu0 %813
  %817 = vset.pattern.permute.xlu0 0
  %818 = vperm.xlu0 %817, %v756
  %v819 = vpop.permute.xlu0 %818
  %822 = vset.pattern.permute.xlu0 0
  %823 = vperm.xlu0 %822, %v757
  %v824 = vpop.permute.xlu0 %823
  %827 = vset.pattern.permute.xlu0 0
  %828 = vperm.xlu0 %827, %v758
  %v829 = vpop.permute.xlu0 %828
  %832 = vset.pattern.permute.xlu0 0
  %833 = vperm.xlu0 %832, %v759
  %v834 = vpop.permute.xlu0 %833
  %837 = vset.pattern.permute.xlu0 0
  %838 = vperm.xlu0 %837, %v760
  %v839 = vpop.permute.xlu0 %838
  %v841 = vmul.f32 %v729, %v764
  %v842 = vmul.f32 %v730, %v769
  %v843 = vmul.f32 %v731, %v774
  %v844 = vmul.f32 %v732, %v779
  %v845 = vmul.f32 %v733, %v784
  %v846 = vmul.f32 %v734, %v789
  %v847 = vmul.f32 %v735, %v794
  %v848 = vmul.f32 %v736, %v799
  %v849 = vmul.f32 %v737, %v804
  %v850 = vmul.f32 %v738, %v809
  %v851 = vmul.f32 %v739, %v814
  %v852 = vmul.f32 %v740, %v819
  %v853 = vmul.f32 %v741, %v824
  %v854 = vmul.f32 %v742, %v829
  %v855 = vmul.f32 %v743, %v834
  %v856 = vmul.f32 %v744, %v839
  %v857 = vadd.f32 %v841, %v842
  %v858 = vadd.f32 %v857, %v843
  %v859 = vadd.f32 %v858, %v844
  %v860 = vadd.f32 %v859, %v845
  %v861 = vadd.f32 %v860, %v846
  %v862 = vadd.f32 %v861, %v847
  %v863 = vadd.f32 %v862, %v848
  %v864 = vadd.f32 %v863, %v849
  %v865 = vadd.f32 %v864, %v850
  %v866 = vadd.f32 %v865, %v851
  %v867 = vadd.f32 %v866, %v852
  %v868 = vadd.f32 %v867, %v853
  %v869 = vadd.f32 %v868, %v854
  %v870 = vadd.f32 %v869, %v855
  %v871 = vadd.f32 %v870, %v856
  %v872 = vrot.slane %v871, 4
  %v873 = vadd.f32 %v871, %v872
  %v874 = vrot.slane %v873, 2
  %v875 = vadd.f32 %v873, %v874
  %v876 = vrot.slane %v875, 1
  %v877 = vadd.f32 %v875, %v876
  %v878 = vld [vmem:[#allocation2] sm:$0x1]
  %880 = vset.pattern.permute.xlu0 0
  %881 = vperm.xlu0 %880, %v878
  %v882 = vpop.permute.xlu0 %881
  %v884 = vlaneseq
  %v885 = vshrl.u32 %v884, 7
  %v886 = vsub.s32 0, %v885
  %v887 = vrot.slane %v882, %v886
  %v888 = vadd.f32 %v877, %v887
  %v889 = vadd.f32 %v57, %v182
  %v890 = vadd.f32 %v889, %v888
  %v891 = vxor.u32 %v890, 2147483648
  %v892 = vmul.f32 %v891, 1.442695
  %v893 = vpow.pop %v892
  %v894 = vadd.f32 %v893, 1.0
  %v895 = vrcp.pop %v894
  %v896 = vmul.f32 1.0, %v895
  %897 = vst [vmem:[%s9] sm:$0x1] %v896
  // Predicated region
  $region38: #{deepfm_forward.1} parent=0 // pred_check
    _
  $region39: #{deepfm_forward.1} parent=0 // pred_check_branch
    %899 = sbr.rel (0) target = $region41
  $region40: #{deepfm_forward.1} parent=0 // pred_region
    _
  $region41: #{deepfm_forward.1} parent=0 // pred_fallthru
    _
  // Predicated region
  $region42: #{deepfm_forward.1} parent=0 // pred_check
    _
  $region43: #{deepfm_forward.1} parent=0 // pred_check_branch
    %901 = sbr.rel (0) target = $region45
  $region44: #{deepfm_forward.1} parent=0 // pred_region
    _
  $region45: #{deepfm_forward.1} parent=0 // pred_fallthru
    _

</llo_original>
